<compile_context>
chip_gen: v7x
topology: tpu7x:2x2x1
jax: 0.10.0
libtpu: 0.0.40
codegen_flags: <defaults>
</compile_context>

<pallas_src>
import functools

import jax
import jax.numpy as jnp
from jax.experimental import pallas as pl
from jax.experimental.pallas import tpu as pltpu


def _round_up(n, m):
    return ((n + m - 1) // m) * m


# ---------------------------------------------------------------------------
# Kernel 1: AdaptiveAvgPool2d(1) spatial reduction (the dominant HBM stream).
# Grid over flattened H*W; partial sums accumulate into the revisited output.
# ---------------------------------------------------------------------------
def _pool_sum_kernel(x_ref, out_ref):
    @pl.when(pl.program_id(0) == 0)
    def _init():
        out_ref[...] = jnp.zeros_like(out_ref)

    # x arrives in its native dtype on the wire; upcast to f32 after the DMA.
    out_ref[...] += jnp.sum(x_ref[...].astype(jnp.float32), axis=-1)


# ---------------------------------------------------------------------------
# Kernel 2: tiny fused tail.  Single grid step, unconditional writes, exact
# sigmoid / softmax.  1/temperature is pre-folded into w_all / b_all.
# ---------------------------------------------------------------------------
def _attention_tail_kernel(sum_ref, w_fc_ref, gamma_ref, beta_ref,
                           w_all_ref, b_all_ref, out_ref,
                           *, inv_hw, kn_off, kernel_num):
    pooled = sum_ref[...] * inv_hw                                    # (B, C_in)

    # fc: 1x1 conv, no bias; weight pre-transposed to (C_in, A).
    y = jnp.dot(pooled, w_fc_ref[...], preferred_element_type=jnp.float32)

    # BatchNorm2d, training-mode batch statistics.  H = W = 1 after pooling so
    # the stats reduce over the batch axis only (biased var, eps = 1e-5).
    mu = jnp.mean(y, axis=0, keepdims=True)
    var = jnp.mean((y - mu) ** 2, axis=0, keepdims=True)
    y = (y - mu) * jax.lax.rsqrt(var + 1e-5) * gamma_ref[...] + beta_ref[...]
    y = jnp.maximum(y, 0.0)                                           # ReLU

    # All four attention heads in one lane-dense matmul.  Columns of w_all are
    # [channel_fc | filter_fc | spatial_fc | kernel_fc | zero pad], already
    # scaled by 1/temperature.
    z = (jnp.dot(y, w_all_ref[...], preferred_element_type=jnp.float32)
         + b_all_ref[...])                                            # (B, P)

    # Exact sigmoid for channel / filter / spatial heads.
    sig = 1.0 / (1.0 + jnp.exp(-z))

    # Exact softmax restricted to the kernel-attention columns via a lane
    # mask, so the packed result is written with a single lane-dense store.
    col = jax.lax.broadcasted_iota(jnp.int32, z.shape, 1)
    kn_mask = (col >= kn_off) & (col < kn_off + kernel_num)
    zk = jnp.where(kn_mask, z, jnp.float32(-1e30))
    m = jnp.max(zk, axis=-1, keepdims=True)
    e = jnp.where(kn_mask, jnp.exp(jnp.minimum(z - m, 0.0)), 0.0)
    sm = e / jnp.sum(e, axis=-1, keepdims=True)

    out_ref[...] = jnp.where(kn_mask, sm, sig)


def init_attention_params(key, in_planes, out_planes, kernel_size, kernel_num,
                          reduction=0.0625, min_channel=16):
    """Deterministic parameter init mirroring the module's _initialize_weights."""
    attention_channel = max(int(in_planes * reduction), min_channel)
    keys = jax.random.split(key, 5)

    def kaiming_fan_out(k, shape):
        # Conv2d 1x1: fan_out = out_channels * kh * kw = shape[0]
        std = (2.0 / shape[0]) ** 0.5
        return std * jax.random.normal(k, shape, dtype=jnp.float32)

    A = attention_channel
    w_fc = kaiming_fan_out(keys[0], (A, in_planes))                 # fc (no bias)
    gamma = jnp.ones((1, A), jnp.float32)                           # bn weight
    beta = jnp.zeros((1, A), jnp.float32)                           # bn bias
    w_ch = kaiming_fan_out(keys[1], (in_planes, A))
    b_ch = jnp.zeros((1, in_planes), jnp.float32)
    w_fl = kaiming_fan_out(keys[2], (out_planes, A))
    b_fl = jnp.zeros((1, out_planes), jnp.float32)
    w_sp = kaiming_fan_out(keys[3], (kernel_size * kernel_size, A))
    b_sp = jnp.zeros((1, kernel_size * kernel_size), jnp.float32)
    w_kn = kaiming_fan_out(keys[4], (kernel_num, A))
    b_kn = jnp.zeros((1, kernel_num), jnp.float32)
    return (w_fc, gamma, beta, w_ch, b_ch, w_fl, b_fl, w_sp, b_sp, w_kn, b_kn)


def attention_forward(x, params, kernel_size, kernel_num,
                      temperature=1.0, tile_hw=512):
    B, C_in, H, W = x.shape
    HW = H * W
    (w_fc, gamma, beta, w_ch, b_ch, w_fl, b_fl, w_sp, b_sp, w_kn, b_kn) = params
    A = w_fc.shape[0]
    C_out = w_fl.shape[0]
    kk = kernel_size * kernel_size
    Kn = kernel_num

    # ---- host-side layout plumbing (tiny arrays, effectively free) --------
    inv_t = 1.0 / float(temperature)        # fold temperature into the heads
    w_fc_t = w_fc.T                                                   # (C_in, A)
    total = C_in + C_out + kk + Kn
    P = _round_up(total, 128)
    w_all = jnp.concatenate([w_ch.T, w_fl.T, w_sp.T, w_kn.T], axis=1) * inv_t
    w_all = jnp.pad(w_all, ((0, 0), (0, P - total)))                  # (A, P)
    b_all = jnp.concatenate([b_ch, b_fl, b_sp, b_kn], axis=1) * inv_t
    b_all = jnp.pad(b_all, ((0, 0), (0, P - total)))                  # (1, P)

    # ---- spatial tiling: grid over flattened H*W (the reduction axis) -----
    x_flat = x.reshape(B, C_in, HW)           # keep native dtype on the wire
    tile = min(_round_up(tile_hw, 128), _round_up(HW, 128))
    HW_pad = _round_up(HW, tile)
    if HW_pad != HW:
        # Zeros do not perturb the accumulated sum; we divide by the true HW.
        x_flat = jnp.pad(x_flat, ((0, 0), (0, 0), (0, HW_pad - HW)))
    grid = (HW_pad // tile,)

    itemsize = jnp.dtype(x.dtype).itemsize
    tile_bytes = B * C_in * tile * itemsize
    vmem_limit = int(min(64 * 1024 * 1024,
                         max(32 * 1024 * 1024, 3 * tile_bytes + (2 << 20))))
    cost = pl.CostEstimate(
        flops=B * C_in * HW_pad,
        transcendentals=0,
        bytes_accessed=B * C_in * HW_pad * itemsize + 4 * B * C_in)

    pooled_sum = pl.pallas_call(
        _pool_sum_kernel,
        out_shape=jax.ShapeDtypeStruct((B, C_in), jnp.float32),
        grid=grid,
        in_specs=[pl.BlockSpec((B, C_in, tile), lambda s: (0, 0, s))],
        out_specs=pl.BlockSpec((B, C_in), lambda s: (0, 0)),
        compiler_params=pltpu.CompilerParams(
            dimension_semantics=("arbitrary",),
            vmem_limit_bytes=vmem_limit),
        cost_estimate=cost,
    )(x_flat)

    tail = functools.partial(_attention_tail_kernel,
                             inv_hw=1.0 / float(HW),
                             kn_off=C_in + C_out + kk,
                             kernel_num=Kn)

    packed = pl.pallas_call(
        tail,
        out_shape=jax.ShapeDtypeStruct((B, P), jnp.float32),
    )(pooled_sum, w_fc_t, gamma, beta, w_all, b_all)

    # Slice / reshape the packed lane-dense output into PyTorch shapes.
    off = 0
    ch = packed[:, off:off + C_in].reshape(B, C_in, 1, 1); off += C_in
    fl = packed[:, off:off + C_out].reshape(B, C_out, 1, 1); off += C_out
    sp = packed[:, off:off + kk].reshape(B, 1, 1, 1, kernel_size, kernel_size); off += kk
    kn = packed[:, off:off + Kn].reshape(B, Kn, 1, 1, 1, 1)
    return ch, fl, sp, kn


def _attention_reference(x, params, kernel_size, kernel_num, temperature=1.0):
    """Pure-JAX reference of the PyTorch module (train-mode BN)."""
    (w_fc, gamma, beta, w_ch, b_ch, w_fl, b_fl, w_sp, b_sp, w_kn, b_kn) = params
    B = x.shape[0]
    pooled = jnp.mean(x.astype(jnp.float32), axis=(2, 3))             # (B, C_in)
    y = pooled @ w_fc.T
    mu = jnp.mean(y, axis=0, keepdims=True)
    var = jnp.mean((y - mu) ** 2, axis=0, keepdims=True)
    y = (y - mu) / jnp.sqrt(var + 1e-5) * gamma + beta
    y = jnp.maximum(y, 0.0)
    ch = jax.nn.sigmoid((y @ w_ch.T + b_ch) / temperature)
    fl = jax.nn.sigmoid((y @ w_fl.T + b_fl) / temperature)
    sp = jax.nn.sigmoid((y @ w_sp.T + b_sp) / temperature)
    kn = jax.nn.softmax((y @ w_kn.T + b_kn) / temperature, axis=-1)
    return (ch.reshape(B, -1, 1, 1), fl.reshape(B, -1, 1, 1),
            sp.reshape(B, 1, 1, 1, kernel_size, kernel_size),
            kn.reshape(B, kernel_num, 1, 1, 1, 1))


if __name__ == "__main__":
    # Small, deterministic config.
    B, in_planes, out_planes = 2, 16, 32
    kernel_size, kernel_num = 3, 4
    H = W = 16

    key = jax.random.PRNGKey(0)
    key_x, key_p = jax.random.split(key)
    x = jax.random.normal(key_x, (B, in_planes, H, W), dtype=jnp.float32)
    params = init_attention_params(key_p, in_planes, out_planes,
                                   kernel_size, kernel_num)

    # tile_hw=128 -> grid=(2,) so the accumulate-across-grid path is exercised.
    outs = attention_forward(x, params, kernel_size, kernel_num,
                             temperature=1.0, tile_hw=128)
    outs = jax.block_until_ready(outs)

    assert outs[0].shape == (B, in_planes, 1, 1)
    assert outs[1].shape == (B, out_planes, 1, 1)
    assert outs[2].shape == (B, 1, 1, 1, kernel_size, kernel_size)
    assert outs[3].shape == (B, kernel_num, 1, 1, 1, 1)
    # kernel attention is an exact softmax -> rows sum to 1 (f32 roundoff only)
    assert jnp.allclose(jnp.sum(outs[3].reshape(B, kernel_num), axis=1),
                        1.0, atol=1e-3)

    # Numerical check against a pure-JAX reference.
    refs = _attention_reference(x, params, kernel_size, kernel_num)
    for o, r in zip(outs, refs):
        assert jnp.allclose(o, r, atol=2e-2, rtol=2e-2)

    print("KERNEL_OK")
</pallas_src>

<mosaic_0001>
module attributes {stable_mosaic.version = 11 : i64} {
  func.func @_pool_sum_kernel(%arg0: i32, %arg1: memref<2x16x128xf32, #tpu.memory_space<vmem>>, %arg2: memref<2x16xf32, #tpu.memory_space<vmem>>) attributes {dimension_semantics = [#tpu.dimension_semantics<arbitrary>], iteration_bounds = array<i64: 2>, scalar_prefetch = 0 : i64, scratch_operands = 0 : i64, tpu.core_type = #tpu.core_type<tc>, window_params = [{transform_indices = @transform_0, window_bounds = array<i64: 2, 16, 128>}, {pipeline_mode = #tpu.pipeline_mode<synchronous>, transform_indices = @transform_1, window_bounds = array<i64: 2, 16>}]} {
    %c0_i32 = arith.constant 0 : i32
    %0 = arith.cmpi eq, %arg0, %c0_i32 : i32
    %1 = arith.extui %0 : i1 to i32
    %c0_i32_0 = arith.constant 0 : i32
    %2 = arith.cmpi ne, %1, %c0_i32_0 : i32
    scf.if %2 {
      %cst_7 = arith.constant 0.000000e+00 : f32
      %8 = vector.broadcast %cst_7 : f32 to vector<2x16xf32>
      %c0_8 = arith.constant 0 : index
      %c0_9 = arith.constant 0 : index
      %9 = vector.load %arg2[%c0_8, %c0_9] : memref<2x16xf32, #tpu.memory_space<vmem>>, vector<2x16xf32>
      tpu.vector_store %arg2[%c0_8, %c0_9], %8 {strides = array<i32>} : memref<2x16xf32, #tpu.memory_space<vmem>>, vector<2x16xf32>,
    } else {
    }
    %c0 = arith.constant 0 : index
    %c0_1 = arith.constant 0 : index
    %3 = vector.load %arg2[%c0, %c0_1] : memref<2x16xf32, #tpu.memory_space<vmem>>, vector<2x16xf32>
    %c0_2 = arith.constant 0 : index
    %c0_3 = arith.constant 0 : index
    %c0_4 = arith.constant 0 : index
    %4 = vector.load %arg1[%c0_2, %c0_3, %c0_4] : memref<2x16x128xf32, #tpu.memory_space<vmem>>, vector<2x16x128xf32>
    %cst = arith.constant dense<0.000000e+00> : vector<2x16xf32>
    %5 = vector.multi_reduction <add>, %4, %cst [2] : vector<2x16x128xf32> to vector<2x16xf32>
    %6 = arith.addf %3, %5 : vector<2x16xf32>
    %c0_5 = arith.constant 0 : index
    %c0_6 = arith.constant 0 : index
    %7 = vector.load %arg2[%c0_5, %c0_6] : memref<2x16xf32, #tpu.memory_space<vmem>>, vector<2x16xf32>
    tpu.vector_store %arg2[%c0_5, %c0_6], %6 {strides = array<i32>} : memref<2x16xf32, #tpu.memory_space<vmem>>, vector<2x16xf32>,
    return
  }
  func.func @transform_0(%arg0: i32) -> (i32, i32, i32) {
    %c0_i32 = arith.constant 0 : i32
    %c0_i32_0 = arith.constant 0 : i32
    %c0_i32_1 = arith.constant 0 : i32
    return %c0_i32, %c0_i32_0, %arg0 : i32, i32, i32
  }
  func.func @transform_1(%arg0: i32) -> (i32, i32) {
    %c0_i32 = arith.constant 0 : i32
    %c0_i32_0 = arith.constant 0 : i32
    %c0_i32_1 = arith.constant 0 : i32
    return %c0_i32, %c0_i32_0 : i32, i32
  }
}

</mosaic_0001>

<llo_original>
// kernel: tpu_custom_call.1
$region0: #{tpu_custom_call.1}
  #allocation0 [shape = 'u32[]', space=smem, size = 0x4, offset = 0x4, fixed_abs, tag = 'smem constant byte address 0x4 - core index']
  #allocation1 [shape = 'u32[144,128]{1,0:T(1,128)}', space=vmem, size = 0x12000, scoped, tag = 'internal scratch']
  %s0 = inlined_call_operand.hbm [shape: f32[2,16,256], index: 0, kind: input, shape index: {}]
  %s1 = inlined_call_operand.hbm [shape: f32[2,16], index: 1, kind: output, shape index: {}]
  %s2 = sld [smem:[#allocation0]]
  $region45: #{tpu_custom_call.1} parent=0
    _
  %s4 = ssub.s32 1, %s2
  %s5 = scalar_select 0, %s4, %s2
  $region1: #{tpu_custom_call.1} parent=0
    #allocation2 [shape = 'u8[32768]{0}', space=vmem, size = 0x8000, scoped, tag = 'input window, operand 0']
    #allocation3 [shape = 's32[2]{0}', space=sflag, size = 0x8, scoped, tag = 'scoped memory for tpu_custom_call.1']
    #allocation4 [shape = 's32[2]{0}', space=sflag, size = 0x8, scoped, tag = 'scoped memory for tpu_custom_call.1']
    #allocation5 [shape = 'u8[1024]{0}', space=vmem, size = 0x400, scoped, tag = 'output window, operand 0, single buffered']
    %6 = vsyncpa [#allocation3], 0
    %s7 = scalar_lea.sflag [#allocation3], 1
    %8 = vsyncpa %s7, 0
    %9 = vsyncpa [#allocation4], 0
    loop: start=0, step=1, limit=4
    $region2: #{tpu_custom_call.1} parent=1 // loop_pre_header
      _
    $region3: #{tpu_custom_call.1} parent=1 // loop_header
      %s11 = sphi 0, %s15
      %p12 = scmp.ge.s32.totalorder %s11, 4
      %s21 = sphi 0, %s23
      %s24 = sphi 0, %s21
      %s25 = sphi 0, %s24
      %s41 = sphi 0, %s25
      %s45 = sphi 0, %s45
      %s47 = sphi 0, %s45
      %s48 = sphi 0, %s47
      %s62 = sphi 0, %s48
    $region4: #{tpu_custom_call.1} parent=1 // loop_header_branch
      %14 = sbr.rel (%p12) target = $region8
    $region5: #{tpu_custom_call.1} parent=1 // loop_body
      %s16 = ssub.s32 %s11, 1
      %s17 = ssub.s32 %s11, 2
      %s18 = sadd.s32 %s11, 1
      %s19 = ssub.s32 %s11, %s18
      %p20 = scmp.eq.s32.totalorder %s19, 0
      %s22 = sadd.s32 %s21, 1
      %s23 = scalar_select %p20, %s21, %s22
      %p26 = pneg %p20
      %p27 = scmp.eq.s32.totalorder %s11, 1
      %p28 = por %p26, %p27
      %p29 = scmp.ne.s32.totalorder %s21, %s24
      %p30 = scmp.eq.s32.totalorder %s11, 0
      %p31 = por %p29, %p30
      %p32 = scmp.ne.s32.totalorder %s21, %s24
      %p33 = scmp.eq.s32.totalorder %s16, 1
      %p34 = por %p32, %p33
      %p35 = scmp.ne.s32.totalorder %s24, %s25
      %p36 = scmp.eq.s32.totalorder %s16, 0
      %p37 = por %p35, %p36
      %p38 = scmp.ne.s32.totalorder %s24, %s25
      %p39 = scmp.eq.s32.totalorder %s17, 1
      %p40 = por %p38, %p39
      %p42 = scmp.ne.s32.totalorder %s25, %s41
      %p43 = scmp.eq.s32.totalorder %s17, 0
      %p44 = por %p42, %p43
      %s46 = sadd.s32 %s45, 1
      %p49 = scmp.eq.s32.totalorder %s11, 1
      %p50 = scmp.ne.s32.totalorder %s45, %s47
      %p51 = scmp.eq.s32.totalorder %s11, 0
      %p52 = por %p50, %p51
      %p53 = scmp.ne.s32.totalorder %s45, %s47
      %p54 = scmp.eq.s32.totalorder %s16, 1
      %p55 = por %p53, %p54
      %p56 = scmp.ne.s32.totalorder %s47, %s48
      %p57 = scmp.eq.s32.totalorder %s16, 0
      %p58 = por %p56, %p57
      %p59 = scmp.ne.s32.totalorder %s47, %s48
      %p60 = scmp.eq.s32.totalorder %s17, 1
      %p61 = por %p59, %p60
      %p63 = scmp.ne.s32.totalorder %s48, %s62
      %p64 = scmp.eq.s32.totalorder %s17, 0
      %p65 = por %p63, %p64
      %p66 = scmp.le.s32.totalorder 1, %s11
      %p67 = scmp.lt.s32.totalorder %s11, 3
      %p68 = pnand %p66, %p67
      %p69 = pneg %p68
      // Predicated region
      $region9: #{tpu_custom_call.1} parent=5 // pred_check
        _
      $region10: #{tpu_custom_call.1} parent=5 // pred_check_branch
        %71 = sbr.rel (%p68) target = $region12
      $region11: #{tpu_custom_call.1} parent=5 // pred_region
        %s72 = ssub.s32 %s11, 1
      $region12: #{tpu_custom_call.1} parent=5 // pred_fallthru
        _
      %p73 = scmp.lt.s32.totalorder %s11, 2
      // Predicated region
      $region13: #{tpu_custom_call.1} parent=5 // pred_check
        %p74 = pneg %p73
      $region14: #{tpu_custom_call.1} parent=5 // pred_check_branch
        %76 = sbr.rel (%p74) target = $region16
      $region15: #{tpu_custom_call.1} parent=5 // pred_region
        // Predicated region
        $region17: #{tpu_custom_call.1} parent=15 // pred_check
          %p77 = pneg %p31
        $region18: #{tpu_custom_call.1} parent=15 // pred_check_branch
          %79 = sbr.rel (%p77) target = $region20
        $region19: #{tpu_custom_call.1} parent=15 // pred_region
          %s80 = sand.u32 %s21, 1
          %s81 = scalar_lea.sflag [#allocation3], %s80
          %s82 = sand.u32 %s21, 1
          %s83 = smul.addr %s82, 32
          %s84 = scalar_lea.vmem [#allocation2], %s83
          %s86 = ssub.s32 512, 512
          %87 = vsyncadd %s81, %s86
          %s88 = smul.addr %s11, 128
          %s89 = scalar_lea.hbm %s0, %s88
          %s90 = sshll.u32 %s84, 4
          %s91 = int_to_ptr.vmem [resolvable:$true] %s90
          %96 = dma.hbm_to_vmem [thread:$0]  %s89, 512, %s91, %s81, 256, 128, 8
        $region20: #{tpu_custom_call.1} parent=15 // pred_fallthru
          _
      $region16: #{tpu_custom_call.1} parent=5 // pred_fallthru
        _
      %p97 = scmp.le.s32.totalorder 1, %s11
      %p98 = scmp.lt.s32.totalorder %s11, 3
      %p99 = pnand %p97, %p98
      %p100 = pneg %p99
      // Predicated region
      $region21: #{tpu_custom_call.1} parent=5 // pred_check
        _
      $region22: #{tpu_custom_call.1} parent=5 // pred_check_branch
        %102 = sbr.rel (%p99) target = $region24
      $region23: #{tpu_custom_call.1} parent=5 // pred_region
        %s103 = ssub.s32 %s11, 1
        %s104 = sand.u32 %s24, 1
        %s105 = scalar_lea.sflag [#allocation3], %s104
        %s106 = sand.u32 %s24, 1
        %s107 = smul.addr %s106, 32
        %s108 = scalar_lea.vmem [#allocation2], %s107
        // Predicated region
        $region25: #{tpu_custom_call.1} parent=23 // pred_check
          %p109 = pneg %p37
        $region26: #{tpu_custom_call.1} parent=23 // pred_check_branch
          %111 = sbr.rel (%p109) target = $region28
        $region27: #{tpu_custom_call.1} parent=23 // pred_region
          %112 = dma.done %s105, 512
        $region28: #{tpu_custom_call.1} parent=23 // pred_fallthru
          _
        %s113 = sand.u32 %s24, 1
        %s114 = scalar_lea.sflag [#allocation3], %s113
        %s115 = sand.u32 %s24, 1
        %s116 = smul.addr %s115, 32
        %s117 = scalar_lea.vmem [#allocation2], %s116
        %p118 = pneg %p37
        %p119 = pneg %p34
        %p120 = pneg %p58
        %p121 = pneg %p55
        %p122 = scmp.eq.s32.totalorder %s16, 0
        // Predicated region
        $region29: #{tpu_custom_call.1} parent=23 // pred_check
          %p123 = pneg %p122
        $region30: #{tpu_custom_call.1} parent=23 // pred_check_branch
          %125 = sbr.rel (%p123) target = $region32
        $region31: #{tpu_custom_call.1} parent=23 // pred_region
          %vm126 = vcmask 123904
          %127 = vst.msk [vmem:[#allocation5] sm:$0x3] %vm126, 0.0
        $region32: #{tpu_custom_call.1} parent=23 // pred_fallthru
          _
        %v128 = vld [vmem:[#allocation5] sm:$0x3]
        %v129 = vld [vmem:[%s108] sm:$0xff]
        %v130 = vld [vmem:[%s108 + $0x8] sm:$0xff]
        %v131 = vld [vmem:[%s108 + $0x10] sm:$0xff]
        %v132 = vld [vmem:[%s108 + $0x18] sm:$0xff]
        %133 = vadd.xlane.f32.xlu0 %v129
        %v134 = vpop.xlane.xlu0 %133
        %135 = vadd.xlane.f32.xlu0 %v130
        %v136 = vpop.xlane.xlu0 %135
        %137 = vadd.xlane.f32.xlu0 %v131
        %v138 = vpop.xlane.xlu0 %137
        %139 = vadd.xlane.f32.xlu0 %v132
        %v140 = vpop.xlane.xlu0 %139
        %v145 = vlaneseq
        %v146 = vand.u32 %v145, 127
        %v147 = vlaneseq
        %v148 = vshrl.u32 %v147, 7
        %v149 = vsub.s32 %v146, %v148
        %v150 = vrot.slane %v134, %v149
        %v151 = vadd.s32 %v146, 4294967288
        %v152 = vlaneseq
        %v153 = vshrl.u32 %v152, 7
        %v154 = vsub.s32 %v151, %v153
        %v155 = vrot.slane %v136, %v154
        %vm156 = vcmask 130112
        %v157 = vsel %vm156, %v155, %v150
        %v158 = vlaneseq
        %v159 = vshrl.u32 %v158, 7
        %v160 = vsub.s32 %v146, %v159
        %v161 = vrot.slane %v138, %v160
        %v162 = vlaneseq
        %v163 = vshrl.u32 %v162, 7
        %v164 = vsub.s32 %v151, %v163
        %v165 = vrot.slane %v140, %v164
        %v166 = vsel %vm156, %v165, %v161
        %vm167 = vcmask 1041409
        %v168 = vsel %vm167, %v166, %v157
        %v170 = vadd.f32 %v128, %v168
        %vm171 = vcmask 123904
        %172 = vst.msk [vmem:[#allocation5] sm:$0x3] %vm171, %v170
        // Predicated region
        $region33: #{tpu_custom_call.1} parent=23 // pred_check
          %p173 = pneg %p55
        $region34: #{tpu_custom_call.1} parent=23 // pred_check_branch
          %175 = sbr.rel (%p173) target = $region36
        $region35: #{tpu_custom_call.1} parent=23 // pred_region
          %s177 = ssub.s32 32, 32
          %178 = vsyncadd [#allocation4], %s177
          %s180 = sshll.u32 [#allocation5], 4
          %s181 = int_to_ptr.vmem [resolvable:$true] %s180
          %183 = dma.vmem_to_hbm [thread:$0]  %s181, 32, %s1, [#allocation4]
        $region36: #{tpu_custom_call.1} parent=23 // pred_fallthru
          _
        // Predicated region
        $region37: #{tpu_custom_call.1} parent=23 // pred_check
          %p184 = pneg %p55
        $region38: #{tpu_custom_call.1} parent=23 // pred_check_branch
          %186 = sbr.rel (%p184) target = $region40
        $region39: #{tpu_custom_call.1} parent=23 // pred_region
          %187 = dma.done [#allocation4], 32
        $region40: #{tpu_custom_call.1} parent=23 // pred_fallthru
          _
      $region24: #{tpu_custom_call.1} parent=5 // pred_fallthru
        _
      %p188 = scmp.le.s32.totalorder 2, %s11
      // Predicated region
      $region41: #{tpu_custom_call.1} parent=5 // pred_check
        %p189 = pneg %p188
      $region42: #{tpu_custom_call.1} parent=5 // pred_check_branch
        %191 = sbr.rel (%p189) target = $region44
      $region43: #{tpu_custom_call.1} parent=5 // pred_region
        %s192 = ssub.s32 %s11, 2
      $region44: #{tpu_custom_call.1} parent=5 // pred_fallthru
        _
    $region6: #{tpu_custom_call.1} parent=1 // loop_footer
      %s15 = sadd.s32 1, %s11
    $region7: #{tpu_custom_call.1} parent=1 // loop_footer_branch
      %10 = sbr.rel target = $region3
    $region8: #{tpu_custom_call.1} parent=1 // loop_exit
      _
    %193 = vsyncpa [#allocation3], 1
    %s194 = scalar_lea.sflag [#allocation3], 1
    %195 = vsyncpa %s194, 1
    %196 = vsyncpa [#allocation4], 1
    %s197 = scalar_lea.sflag [#allocation4], 1
    %198 = vsyncpa %s197, 1

</llo_original>
